<compile_context>
chip_gen: v7x
topology: tpu7x:2x2x1
jax: 0.10.0
libtpu: 0.0.40
codegen_flags: <defaults>
</compile_context>

<pallas_src>
import jax
import jax.numpy as jnp
from jax.experimental import pallas as pl
from jax.experimental.pallas import tpu as pltpu


def _round_up(x, m):
    return ((x + m - 1) // m) * m


def _mlp_kernel(x_ref, w1_ref, b1_ref, w2_ref, b2_ref, w3_ref, b3_ref, o_ref):
    # Cast the f32 activation tile to bf16 in-kernel (keeps HBM x traffic at 4 B/elem,
    # no wrapper pad/cast pass). Biases / accumulation stay f32 (safe on v5e VPU).
    x = x_ref[...].astype(jnp.bfloat16)

    # Layer 1: bf16 MXU matmul, f32 accumulate; bias + ReLU in f32.
    h1 = jnp.dot(x, w1_ref[...], preferred_element_type=jnp.float32)
    h1 = jnp.maximum(h1 + b1_ref[...], 0.0)

    # Layer 2.
    h2 = jnp.dot(h1.astype(jnp.bfloat16), w2_ref[...],
                 preferred_element_type=jnp.float32)
    h2 = jnp.maximum(h2 + b2_ref[...], 0.0)

    # Output layer: MXU runs on the 128-lane padded head (clean shape, free — MXU has
    # huge slack); only the first num_classes lanes are stored (tiny HBM writeback).
    logits = jnp.dot(h2.astype(jnp.bfloat16), w3_ref[...],
                     preferred_element_type=jnp.float32)
    logits = logits + b3_ref[...]
    o_ref[...] = logits[:, : o_ref.shape[-1]].astype(o_ref.dtype)


def prepare_params(params):
    """One-time parameter preparation: bf16 MXU weights, lane-padded output head."""
    num_classes = params["w3"].shape[1]
    npad = _round_up(max(num_classes, 128), 128)

    w3 = params["w3"].astype(jnp.bfloat16)
    b3 = params["b3"].reshape(1, -1).astype(jnp.float32)
    if npad != num_classes:
        w3 = jnp.pad(w3, ((0, 0), (0, npad - num_classes)))
        b3 = jnp.pad(b3, ((0, 0), (0, npad - num_classes)))

    return {
        "w1": params["w1"].astype(jnp.bfloat16),
        "b1": params["b1"].reshape(1, -1).astype(jnp.float32),
        "w2": params["w2"].astype(jnp.bfloat16),
        "b2": params["b2"].reshape(1, -1).astype(jnp.float32),
        "w3": w3,
        "b3": b3,
        "num_classes": num_classes,
    }


def dnn_classifier_forward(x, prepared, *, block_batch=1024):
    """Fused 3-layer MLP forward. x: (B, input_dim) f32. Returns (B, num_classes) f32."""
    B, D = x.shape
    H1 = prepared["w1"].shape[1]
    H2 = prepared["w2"].shape[1]
    NPAD = prepared["w3"].shape[1]
    C = prepared["num_classes"]

    # Batch tile: multiple of 8 sublanes; aim for >= 2 grid steps so both v7x TensorCores
    # get work (no-op on v5e/v6e), capped by block_batch.
    TB = min(_round_up(block_batch, 8), max(8, _round_up(pl.cdiv(B, 2), 8)))

    # VMEM budget: double-buffered x/out tiles + resident weights + f32 intermediates.
    def vmem_bytes(tb):
        x_buf = 2 * tb * D * 4                                   # f32 x, double-buffered
        out_buf = 2 * tb * NPAD * 4                              # lane-padded out tiles
        w_buf = 2 * (D * H1 + H1 * H2 + H2 * NPAD) * 2           # bf16 weights (x2 bufs)
        b_buf = 2 * (H1 + H2 + NPAD) * 4
        inter = 2 * tb * (H1 + H2) * 4                           # h1/h2 staging
        return x_buf + out_buf + w_buf + b_buf + inter

    # Keep the pipeline well under the smallest scoped default (v5e 16 MiB is too tight
    # for big D; we raise the limit explicitly) and under v7x's 64 MiB physical.
    while TB > 8 and vmem_bytes(TB) > (28 << 20):
        TB = max(8, _round_up(TB // 2, 8))
    vmem_limit = int(min(max(2 * vmem_bytes(TB), 32 << 20), 48 << 20))

    grid = (pl.cdiv(B, TB),)

    flops = 2 * B * (D * H1 + H1 * H2 + H2 * NPAD)
    bytes_accessed = (B * (D + C) * 4
                      + (D * H1 + H1 * H2 + H2 * NPAD) * 2
                      + (H1 + H2 + NPAD) * 4)

    out = pl.pallas_call(
        _mlp_kernel,
        out_shape=jax.ShapeDtypeStruct((B, C), jnp.float32),
        grid_spec=pltpu.PrefetchScalarGridSpec(
            num_scalar_prefetch=0,
            grid=grid,
            in_specs=[
                pl.BlockSpec((TB, D), lambda i: (i, 0)),      # x: tiled over batch
                pl.BlockSpec((D, H1), lambda i: (0, 0)),      # weights/biases VMEM-resident
                pl.BlockSpec((1, H1), lambda i: (0, 0)),
                pl.BlockSpec((H1, H2), lambda i: (0, 0)),
                pl.BlockSpec((1, H2), lambda i: (0, 0)),
                pl.BlockSpec((H2, NPAD), lambda i: (0, 0)),
                pl.BlockSpec((1, NPAD), lambda i: (0, 0)),
            ],
            out_specs=pl.BlockSpec((TB, C), lambda i: (i, 0)),
        ),
        compiler_params=pltpu.CompilerParams(
            dimension_semantics=("parallel",),
            vmem_limit_bytes=vmem_limit,
        ),
        cost_estimate=pl.CostEstimate(
            flops=flops, transcendentals=0, bytes_accessed=bytes_accessed),
    )(x.astype(jnp.float32),
      prepared["w1"], prepared["b1"],
      prepared["w2"], prepared["b2"],
      prepared["w3"], prepared["b3"])

    return out


def init_params(key, input_dim, hidden_units=(128, 64), num_classes=2):
    """Deterministic parameter init (Kaiming-uniform-ish like torch defaults)."""
    dims = [input_dim, hidden_units[0], hidden_units[1], num_classes]
    params = {}
    keys = jax.random.split(key, 6)
    for i in range(3):
        fan_in = dims[i]
        bound = 1.0 / jnp.sqrt(fan_in)
        # Stored as (in, out): kernel computes x @ W + b (== x @ W.T + b for torch layout).
        params[f"w{i + 1}"] = jax.random.uniform(
            keys[2 * i], (dims[i], dims[i + 1]), jnp.float32, -bound, bound)
        params[f"b{i + 1}"] = jax.random.uniform(
            keys[2 * i + 1], (dims[i + 1],), jnp.float32, -bound, bound)
    return params


def reference_forward(x, prepared):
    """Pure-JAX reference mirroring the kernel's bf16-operand / f32-accumulate math."""
    xb = x.astype(jnp.bfloat16)
    h1 = jnp.maximum(
        jnp.dot(xb, prepared["w1"], preferred_element_type=jnp.float32)
        + prepared["b1"], 0.0)
    h2 = jnp.maximum(
        jnp.dot(h1.astype(jnp.bfloat16), prepared["w2"],
                preferred_element_type=jnp.float32) + prepared["b2"], 0.0)
    logits = (jnp.dot(h2.astype(jnp.bfloat16), prepared["w3"],
                      preferred_element_type=jnp.float32) + prepared["b3"])
    return logits[:, : prepared["num_classes"]]


if __name__ == "__main__":
    key = jax.random.PRNGKey(0)
    k_x, k_p, k_x2 = jax.random.split(key, 3)

    batch = 8
    input_dim = 32
    hidden_units = (128, 64)
    num_classes = 2

    x = jax.random.normal(k_x, (batch, input_dim), dtype=jnp.float32)
    params = init_params(k_p, input_dim, hidden_units, num_classes)
    prepared = prepare_params(params)   # one-time weight prep (bf16 + lane padding)

    # Small-batch check (single grid step).
    out = dnn_classifier_forward(x, prepared)
    out = jax.block_until_ready(out)
    ref = reference_forward(x, prepared)
    assert out.shape == (batch, num_classes)
    assert jnp.allclose(out, ref, atol=1e-3, rtol=1e-3), "mismatch vs reference (B=8)"

    # Larger, non-multiple batch: exercises the uneven (pl.cdiv) grid path (3 steps,
    # last block partial: 300 = 2*128 + 44).
    x2 = jax.random.normal(k_x2, (300, input_dim), dtype=jnp.float32)
    out2 = dnn_classifier_forward(x2, prepared, block_batch=128)
    out2 = jax.block_until_ready(out2)
    ref2 = reference_forward(x2, prepared)
    assert out2.shape == (300, num_classes)
    assert jnp.allclose(out2, ref2, atol=1e-3, rtol=1e-3), "mismatch vs reference (B=300)"

    print("KERNEL_OK")
</pallas_src>

<mosaic_0001>
module attributes {stable_mosaic.version = 11 : i64} {
  func.func @_mlp_kernel(%arg0: i32, %arg1: memref<8x32xf32, #tpu.memory_space<vmem>>, %arg2: memref<32x128xbf16, #tpu.memory_space<vmem>>, %arg3: memref<1x128xf32, #tpu.memory_space<vmem>>, %arg4: memref<128x64xbf16, #tpu.memory_space<vmem>>, %arg5: memref<1x64xf32, #tpu.memory_space<vmem>>, %arg6: memref<64x128xbf16, #tpu.memory_space<vmem>>, %arg7: memref<1x128xf32, #tpu.memory_space<vmem>>, %arg8: memref<8x2xf32, #tpu.memory_space<vmem>>) attributes {dimension_semantics = [#tpu.dimension_semantics<parallel>], iteration_bounds = array<i64: 1>, scalar_prefetch = 0 : i64, scratch_operands = 0 : i64, tpu.core_type = #tpu.core_type<tc>, window_params = [{transform_indices = @transform_0, window_bounds = array<i64: 8, 32>}, {pipeline_mode = #tpu.pipeline_mode<synchronous>, transform_indices = @transform_1, window_bounds = array<i64: 32, 128>}, {pipeline_mode = #tpu.pipeline_mode<synchronous>, transform_indices = @transform_2, window_bounds = array<i64: 1, 128>}, {pipeline_mode = #tpu.pipeline_mode<synchronous>, transform_indices = @transform_3, window_bounds = array<i64: 128, 64>}, {pipeline_mode = #tpu.pipeline_mode<synchronous>, transform_indices = @transform_4, window_bounds = array<i64: 1, 64>}, {pipeline_mode = #tpu.pipeline_mode<synchronous>, transform_indices = @transform_5, window_bounds = array<i64: 64, 128>}, {pipeline_mode = #tpu.pipeline_mode<synchronous>, transform_indices = @transform_6, window_bounds = array<i64: 1, 128>}, {transform_indices = @transform_7, window_bounds = array<i64: 8, 2>}]} {
    %c0 = arith.constant 0 : index
    %c0_0 = arith.constant 0 : index
    %0 = vector.load %arg1[%c0, %c0_0] : memref<8x32xf32, #tpu.memory_space<vmem>>, vector<8x32xf32>
    %1 = arith.truncf %0 : vector<8x32xf32> to vector<8x32xbf16>
    %c0_1 = arith.constant 0 : index
    %c0_2 = arith.constant 0 : index
    %2 = vector.load %arg2[%c0_1, %c0_2] : memref<32x128xbf16, #tpu.memory_space<vmem>>, vector<32x128xbf16>
    %cst = arith.constant dense<0.000000e+00> : vector<8x128xf32>
    %3 = tpu.matmul %1, %2, %cst {dimension_numbers = #tpu.dot_dimension_numbers<[1], [0], [0], [1], [0, 0, 1, 1], [], []>} : vector<8x32xbf16>, vector<32x128xbf16>, vector<8x128xf32> -> vector<8x128xf32>
    %c0_3 = arith.constant 0 : index
    %c0_4 = arith.constant 0 : index
    %4 = vector.load %arg3[%c0_3, %c0_4] : memref<1x128xf32, #tpu.memory_space<vmem>>, vector<1x128xf32>
    %5 = vector.broadcast %4 : vector<1x128xf32> to vector<8x128xf32>
    %6 = arith.addf %3, %5 : vector<8x128xf32>
    %cst_5 = arith.constant 0.000000e+00 : f32
    %7 = vector.broadcast %cst_5 : f32 to vector<8x128xf32>
    %8 = arith.maximumf %6, %7 : vector<8x128xf32>
    %9 = arith.truncf %8 : vector<8x128xf32> to vector<8x128xbf16>
    %c0_6 = arith.constant 0 : index
    %c0_7 = arith.constant 0 : index
    %10 = vector.load %arg4[%c0_6, %c0_7] : memref<128x64xbf16, #tpu.memory_space<vmem>>, vector<128x64xbf16>
    %cst_8 = arith.constant dense<0.000000e+00> : vector<8x64xf32>
    %11 = tpu.matmul %9, %10, %cst_8 {dimension_numbers = #tpu.dot_dimension_numbers<[1], [0], [0], [1], [0, 0, 1, 1], [], []>} : vector<8x128xbf16>, vector<128x64xbf16>, vector<8x64xf32> -> vector<8x64xf32>
    %c0_9 = arith.constant 0 : index
    %c0_10 = arith.constant 0 : index
    %12 = vector.load %arg5[%c0_9, %c0_10] : memref<1x64xf32, #tpu.memory_space<vmem>>, vector<1x64xf32>
    %13 = vector.broadcast %12 : vector<1x64xf32> to vector<8x64xf32>
    %14 = arith.addf %11, %13 : vector<8x64xf32>
    %cst_11 = arith.constant 0.000000e+00 : f32
    %15 = vector.broadcast %cst_11 : f32 to vector<8x64xf32>
    %16 = arith.maximumf %14, %15 : vector<8x64xf32>
    %17 = arith.truncf %16 : vector<8x64xf32> to vector<8x64xbf16>
    %c0_12 = arith.constant 0 : index
    %c0_13 = arith.constant 0 : index
    %18 = vector.load %arg6[%c0_12, %c0_13] : memref<64x128xbf16, #tpu.memory_space<vmem>>, vector<64x128xbf16>
    %cst_14 = arith.constant dense<0.000000e+00> : vector<8x128xf32>
    %19 = tpu.matmul %17, %18, %cst_14 {dimension_numbers = #tpu.dot_dimension_numbers<[1], [0], [0], [1], [0, 0, 1, 1], [], []>} : vector<8x64xbf16>, vector<64x128xbf16>, vector<8x128xf32> -> vector<8x128xf32>
    %c0_15 = arith.constant 0 : index
    %c0_16 = arith.constant 0 : index
    %20 = vector.load %arg7[%c0_15, %c0_16] : memref<1x128xf32, #tpu.memory_space<vmem>>, vector<1x128xf32>
    %21 = vector.broadcast %20 : vector<1x128xf32> to vector<8x128xf32>
    %22 = arith.addf %19, %21 : vector<8x128xf32>
    %23 = vector.extract_strided_slice %22 {offsets = [0, 0], sizes = [8, 2], strides = [1, 1]} : vector<8x128xf32> to vector<8x2xf32>
    %c0_17 = arith.constant 0 : index
    %c0_18 = arith.constant 0 : index
    %24 = vector.load %arg8[%c0_17, %c0_18] : memref<8x2xf32, #tpu.memory_space<vmem>>, vector<8x2xf32>
    tpu.vector_store %arg8[%c0_17, %c0_18], %23 {strides = array<i32>} : memref<8x2xf32, #tpu.memory_space<vmem>>, vector<8x2xf32>,
    return
  }
  func.func @transform_0(%arg0: i32) -> (i32, i32) {
    %c0_i32 = arith.constant 0 : i32
    %c0_i32_0 = arith.constant 0 : i32
    return %arg0, %c0_i32 : i32, i32
  }
  func.func @transform_1(%arg0: i32) -> (i32, i32) {
    %c0_i32 = arith.constant 0 : i32
    %c0_i32_0 = arith.constant 0 : i32
    %c0_i32_1 = arith.constant 0 : i32
    return %c0_i32, %c0_i32_0 : i32, i32
  }
  func.func @transform_2(%arg0: i32) -> (i32, i32) {
    %c0_i32 = arith.constant 0 : i32
    %c0_i32_0 = arith.constant 0 : i32
    %c0_i32_1 = arith.constant 0 : i32
    return %c0_i32, %c0_i32_0 : i32, i32
  }
  func.func @transform_3(%arg0: i32) -> (i32, i32) {
    %c0_i32 = arith.constant 0 : i32
    %c0_i32_0 = arith.constant 0 : i32
    %c0_i32_1 = arith.constant 0 : i32
    return %c0_i32, %c0_i32_0 : i32, i32
  }
  func.func @transform_4(%arg0: i32) -> (i32, i32) {
    %c0_i32 = arith.constant 0 : i32
    %c0_i32_0 = arith.constant 0 : i32
    %c0_i32_1 = arith.constant 0 : i32
    return %c0_i32, %c0_i32_0 : i32, i32
  }
  func.func @transform_5(%arg0: i32) -> (i32, i32) {
    %c0_i32 = arith.constant 0 : i32
    %c0_i32_0 = arith.constant 0 : i32
    %c0_i32_1 = arith.constant 0 : i32
    return %c0_i32, %c0_i32_0 : i32, i32
  }
  func.func @transform_6(%arg0: i32) -> (i32, i32) {
    %c0_i32 = arith.constant 0 : i32
    %c0_i32_0 = arith.constant 0 : i32
    %c0_i32_1 = arith.constant 0 : i32
    return %c0_i32, %c0_i32_0 : i32, i32
  }
  func.func @transform_7(%arg0: i32) -> (i32, i32) {
    %c0_i32 = arith.constant 0 : i32
    %c0_i32_0 = arith.constant 0 : i32
    return %arg0, %c0_i32 : i32, i32
  }
}

</mosaic_0001>

<llo_original>
// kernel: tpu_custom_call.1
$region0: #{tpu_custom_call.1}
  #allocation0 [shape = 'u32[]', space=smem, size = 0x4, offset = 0x4, fixed_abs, tag = 'smem constant byte address 0x4 - core index']
  #allocation1 [shape = 'u32[144,128]{1,0:T(1,128)}', space=vmem, size = 0x12000, scoped, tag = 'internal scratch']
  %s0 = inlined_call_operand.vmem [shape: f32[8,32], index: 0, kind: input, shape index: {}]
  %s1 = inlined_call_operand.vmem [shape: bf16[32,128], index: 1, kind: input, shape index: {}]
  %s2 = inlined_call_operand.vmem [shape: f32[1,128], index: 2, kind: input, shape index: {}]
  %s3 = inlined_call_operand.vmem [shape: bf16[128,64], index: 3, kind: input, shape index: {}]
  %s4 = inlined_call_operand.vmem [shape: f32[1,64], index: 4, kind: input, shape index: {}]
  %s5 = inlined_call_operand.vmem [shape: bf16[64,128], index: 5, kind: input, shape index: {}]
  %s6 = inlined_call_operand.vmem [shape: f32[1,128], index: 6, kind: input, shape index: {}]
  %s7 = inlined_call_operand.vmem [shape: f32[8,2], index: 7, kind: output, shape index: {}]
  %s8 = sld [smem:[#allocation0]]
  $region38: #{tpu_custom_call.1} parent=0
    _
  %s10 = ssub.s32 1, %s8
  %s11 = scalar_select 0, %s10, %s8
  // Predicated region
  $region2: #{tpu_custom_call.1} parent=0 // pred_check
    _
  $region3: #{tpu_custom_call.1} parent=0 // pred_check_branch
    %13 = sbr.rel (0) target = $region5
  $region4: #{tpu_custom_call.1} parent=0 // pred_region
    _
  $region5: #{tpu_custom_call.1} parent=0 // pred_fallthru
    _
  // Predicated region
  $region6: #{tpu_custom_call.1} parent=0 // pred_check
    _
  $region7: #{tpu_custom_call.1} parent=0 // pred_check_branch
    %15 = sbr.rel (0) target = $region9
  $region8: #{tpu_custom_call.1} parent=0 // pred_region
    _
  $region9: #{tpu_custom_call.1} parent=0 // pred_fallthru
    _
  // Predicated region
  $region10: #{tpu_custom_call.1} parent=0 // pred_check
    _
  $region11: #{tpu_custom_call.1} parent=0 // pred_check_branch
    %17 = sbr.rel (0) target = $region13
  $region12: #{tpu_custom_call.1} parent=0 // pred_region
    _
  $region13: #{tpu_custom_call.1} parent=0 // pred_fallthru
    _
  // Predicated region
  $region14: #{tpu_custom_call.1} parent=0 // pred_check
    _
  $region15: #{tpu_custom_call.1} parent=0 // pred_check_branch
    %19 = sbr.rel (0) target = $region17
  $region16: #{tpu_custom_call.1} parent=0 // pred_region
    _
  $region17: #{tpu_custom_call.1} parent=0 // pred_fallthru
    _
  // Predicated region
  $region18: #{tpu_custom_call.1} parent=0 // pred_check
    _
  $region19: #{tpu_custom_call.1} parent=0 // pred_check_branch
    %21 = sbr.rel (0) target = $region21
  $region20: #{tpu_custom_call.1} parent=0 // pred_region
    _
  $region21: #{tpu_custom_call.1} parent=0 // pred_fallthru
    _
  // Predicated region
  $region22: #{tpu_custom_call.1} parent=0 // pred_check
    _
  $region23: #{tpu_custom_call.1} parent=0 // pred_check_branch
    %23 = sbr.rel (0) target = $region25
  $region24: #{tpu_custom_call.1} parent=0 // pred_region
    _
  $region25: #{tpu_custom_call.1} parent=0 // pred_fallthru
    _
  // Predicated region
  $region26: #{tpu_custom_call.1} parent=0 // pred_check
    _
  $region27: #{tpu_custom_call.1} parent=0 // pred_check_branch
    %25 = sbr.rel (0) target = $region29
  $region28: #{tpu_custom_call.1} parent=0 // pred_region
    _
  $region29: #{tpu_custom_call.1} parent=0 // pred_fallthru
    _
  %v27 = vld [vmem:[%s0] sm:$0xff]
  %v28 = vpack.c.bf16 %v27, %v27
  %v29 = vld [vmem:[%s1] sm:$0xf]
  %v30 = vld [vmem:[%s1 + $0x4] sm:$0xf]
  %v31 = vld [vmem:[%s1 + $0x8] sm:$0xf]
  %v32 = vld [vmem:[%s1 + $0xc] sm:$0xf]
  %v33 = vld [vmem:[%s2] sm:$0x1]
  %v35 = vlaneseq
  %v36 = vshrl.u32 %v35, 7
  %v37 = vsub.s32 0, %v36
  %v38 = vrot.slane %v33, %v37
  %v44 = vunpack.c.l.b16 %v29
  %v45 = vunpack.c.l.b16 %v30
  %v46 = vunpack.c.l.b16 %v31
  %v47 = vunpack.c.l.b16 %v32
  %v48 = vpack.c.b16 %v45, %v44
  %v49 = vpack.c.b16 %v47, %v46
  %vm52 = vcmask 261120
  %v54 = vsel %vm52, %v28, 0
  %56 = vmatprep.subr.bf16.mxu0 0
  %57 = vmatpush1.bf16.msra.mxu0 %v48
  %58 = vmatprep.subr.bf16.mxu0 0
  %59 = vmatpush1.bf16.msra.mxu0 %v49
  %60 = vmatprep.subr.bf16.mxu0 0
  %61 = vmatpush1.bf16.msra.mxu0 0
  %62 = vmatprep.subr.bf16.mxu0 0
  %63 = vmatpush1.bf16.msra.mxu0 0
  %64 = vmatprep.subr.bf16.mxu0 0
  %65 = vmatpush1.bf16.msra.mxu0 0
  %66 = vmatprep.subr.bf16.mxu0 0
  %67 = vmatpush1.bf16.msra.mxu0 0
  %68 = vmatprep.subr.bf16.mxu0 0
  %69 = vmatpush1.bf16.msra.mxu0 0
  %70 = vmatprep.subr.bf16.mxu0 0
  %71 = vmatpush1.bf16.msra.mxu0 0
  %72 = vmatprep.subr.bf16.mxu0 0
  %73 = vmatpush1.bf16.msra.mxu0 0
  %74 = vmatprep.subr.bf16.mxu0 0
  %75 = vmatpush1.bf16.msra.mxu0 0
  %76 = vmatprep.subr.bf16.mxu0 0
  %77 = vmatpush1.bf16.msra.mxu0 0
  %78 = vmatprep.subr.bf16.mxu0 0
  %79 = vmatpush1.bf16.msra.mxu0 0
  %80 = vmatprep.subr.bf16.mxu0 0
  %81 = vmatpush1.bf16.msra.mxu0 0
  %82 = vmatprep.subr.bf16.mxu0 0
  %83 = vmatpush1.bf16.msra.mxu0 0
  %84 = vmatprep.subr.bf16.mxu0 0
  %85 = vmatpush1.bf16.msra.mxu0 0
  %86 = vmatprep.subr.bf16.mxu0 0
  %87 = vmatpush1.bf16.msra.mxu0 0
  %88 = vmatprep.mubr.bf16.mxu0 0
  %89 = vmatmul.mubr.bf16.gmra.mrb[0].mxu0 %v54
  %v90 = vpop.f32.mrb[0].mxu0
  %v91 = vadd.f32 %v38, %v90
  %v92 = vpop.f32.mrb[0].mxu0
  %v93 = vpop.f32.mrb[0].mxu0
  %v94 = vpop.f32.mrb[0].mxu0
  %95 = vdwg.mxu0
  %v96 = vmax.f32 %v91, 0.0
  %v97 = vpack.c.bf16 %v96, %v96
  %v98 = vld [vmem:[%s3] sm:$0xf]
  %v99 = vld [vmem:[%s3 + $0x4] sm:$0xf]
  %v100 = vld [vmem:[%s3 + $0x8] sm:$0xf]
  %v101 = vld [vmem:[%s3 + $0xc] sm:$0xf]
  %v102 = vld [vmem:[%s3 + $0x10] sm:$0xf]
  %v103 = vld [vmem:[%s3 + $0x14] sm:$0xf]
  %v104 = vld [vmem:[%s3 + $0x18] sm:$0xf]
  %v105 = vld [vmem:[%s3 + $0x1c] sm:$0xf]
  %v106 = vld [vmem:[%s3 + $0x20] sm:$0xf]
  %v107 = vld [vmem:[%s3 + $0x24] sm:$0xf]
  %v108 = vld [vmem:[%s3 + $0x28] sm:$0xf]
  %v109 = vld [vmem:[%s3 + $0x2c] sm:$0xf]
  %v110 = vld [vmem:[%s3 + $0x30] sm:$0xf]
  %v111 = vld [vmem:[%s3 + $0x34] sm:$0xf]
  %v112 = vld [vmem:[%s3 + $0x38] sm:$0xf]
  %v113 = vld [vmem:[%s3 + $0x3c] sm:$0xf]
  %v114 = vld [vmem:[%s4] sm:$0x1]
  %v116 = vlaneseq
  %v117 = vshrl.u32 %v116, 7
  %v118 = vsub.s32 0, %v117
  %v119 = vrot.slane %v114, %v118
  %v137 = vunpack.c.l.b16 %v98
  %v138 = vunpack.c.l.b16 %v99
  %v139 = vunpack.c.l.b16 %v100
  %v140 = vunpack.c.l.b16 %v101
  %v141 = vunpack.c.l.b16 %v102
  %v142 = vunpack.c.l.b16 %v103
  %v143 = vunpack.c.l.b16 %v104
  %v144 = vunpack.c.l.b16 %v105
  %v145 = vunpack.c.l.b16 %v106
  %v146 = vunpack.c.l.b16 %v107
  %v147 = vunpack.c.l.b16 %v108
  %v148 = vunpack.c.l.b16 %v109
  %v149 = vunpack.c.l.b16 %v110
  %v150 = vunpack.c.l.b16 %v111
  %v151 = vunpack.c.l.b16 %v112
  %v152 = vunpack.c.l.b16 %v113
  %v153 = vpack.c.b16 %v138, %v137
  %v154 = vpack.c.b16 %v140, %v139
  %v155 = vpack.c.b16 %v142, %v141
  %v156 = vpack.c.b16 %v144, %v143
  %v157 = vpack.c.b16 %v146, %v145
  %v158 = vpack.c.b16 %v148, %v147
  %v159 = vpack.c.b16 %v150, %v149
  %v160 = vpack.c.b16 %v152, %v151
  %169 = vmatprep.subr.bf16.mxu0 0
  %170 = vmatpush1.bf16.msra.mxu0 %v153
  %171 = vmatprep.subr.bf16.mxu0 0
  %172 = vmatpush1.bf16.msra.mxu0 %v154
  %173 = vmatprep.subr.bf16.mxu0 0
  %174 = vmatpush1.bf16.msra.mxu0 %v155
  %175 = vmatprep.subr.bf16.mxu0 0
  %176 = vmatpush1.bf16.msra.mxu0 %v156
  %177 = vmatprep.subr.bf16.mxu0 0
  %178 = vmatpush1.bf16.msra.mxu0 %v157
  %179 = vmatprep.subr.bf16.mxu0 0
  %180 = vmatpush1.bf16.msra.mxu0 %v158
  %181 = vmatprep.subr.bf16.mxu0 0
  %182 = vmatpush1.bf16.msra.mxu0 %v159
  %183 = vmatprep.subr.bf16.mxu0 0
  %184 = vmatpush1.bf16.msra.mxu0 %v160
  %185 = vmatprep.subr.bf16.mxu0 0
  %186 = vmatpush1.bf16.msra.mxu0 0
  %187 = vmatprep.subr.bf16.mxu0 0
  %188 = vmatpush1.bf16.msra.mxu0 0
  %189 = vmatprep.subr.bf16.mxu0 0
  %190 = vmatpush1.bf16.msra.mxu0 0
  %191 = vmatprep.subr.bf16.mxu0 0
  %192 = vmatpush1.bf16.msra.mxu0 0
  %193 = vmatprep.subr.bf16.mxu0 0
  %194 = vmatpush1.bf16.msra.mxu0 0
  %195 = vmatprep.subr.bf16.mxu0 0
  %196 = vmatpush1.bf16.msra.mxu0 0
  %197 = vmatprep.subr.bf16.mxu0 0
  %198 = vmatpush1.bf16.msra.mxu0 0
  %199 = vmatprep.subr.bf16.mxu0 0
  %200 = vmatpush1.bf16.msra.mxu0 0
  %201 = vmatprep.mubr.bf16.mxu0 0
  %202 = vmatmul.mubr.bf16.gmra.mrb[0].mxu0 %v97
  %v203 = vpop.f32.mrb[0].mxu0
  %v204 = vadd.f32 %v119, %v203
  %v205 = vpop.f32.mrb[0].mxu0
  %v206 = vpop.f32.mrb[0].mxu0
  %v207 = vpop.f32.mrb[0].mxu0
  %208 = vdwg.mxu0
  %v209 = vmax.f32 %v204, 0.0
  %v210 = vpack.c.bf16 %v209, %v209
  %v211 = vld [vmem:[%s5] sm:$0xf]
  %v212 = vld [vmem:[%s5 + $0x4] sm:$0xf]
  %v213 = vld [vmem:[%s5 + $0x8] sm:$0xf]
  %v214 = vld [vmem:[%s5 + $0xc] sm:$0xf]
  %v215 = vld [vmem:[%s5 + $0x10] sm:$0xf]
  %v216 = vld [vmem:[%s5 + $0x14] sm:$0xf]
  %v217 = vld [vmem:[%s5 + $0x18] sm:$0xf]
  %v218 = vld [vmem:[%s5 + $0x1c] sm:$0xf]
  %v219 = vld [vmem:[%s6] sm:$0x1]
  %v221 = vlaneseq
  %v222 = vshrl.u32 %v221, 7
  %v223 = vsub.s32 0, %v222
  %v224 = vrot.slane %v219, %v223
  %v234 = vunpack.c.l.b16 %v211
  %v235 = vunpack.c.l.b16 %v212
  %v236 = vunpack.c.l.b16 %v213
  %v237 = vunpack.c.l.b16 %v214
  %v238 = vunpack.c.l.b16 %v215
  %v239 = vunpack.c.l.b16 %v216
  %v240 = vunpack.c.l.b16 %v217
  %v241 = vunpack.c.l.b16 %v218
  %v242 = vpack.c.b16 %v235, %v234
  %v243 = vpack.c.b16 %v237, %v236
  %v244 = vpack.c.b16 %v239, %v238
  %v245 = vpack.c.b16 %v241, %v240
  %vm250 = vcmask 523264
  %v252 = vsel %vm250, %v210, 0
  %254 = vmatprep.subr.bf16.mxu0 0
  %255 = vmatpush1.bf16.msra.mxu0 %v242
  %256 = vmatprep.subr.bf16.mxu0 0
  %257 = vmatpush1.bf16.msra.mxu0 %v243
  %258 = vmatprep.subr.bf16.mxu0 0
  %259 = vmatpush1.bf16.msra.mxu0 %v244
  %260 = vmatprep.subr.bf16.mxu0 0
  %261 = vmatpush1.bf16.msra.mxu0 %v245
  %262 = vmatprep.subr.bf16.mxu0 0
  %263 = vmatpush1.bf16.msra.mxu0 0
  %264 = vmatprep.subr.bf16.mxu0 0
  %265 = vmatpush1.bf16.msra.mxu0 0
  %266 = vmatprep.subr.bf16.mxu0 0
  %267 = vmatpush1.bf16.msra.mxu0 0
  %268 = vmatprep.subr.bf16.mxu0 0
  %269 = vmatpush1.bf16.msra.mxu0 0
  %270 = vmatprep.subr.bf16.mxu0 0
  %271 = vmatpush1.bf16.msra.mxu0 0
  %272 = vmatprep.subr.bf16.mxu0 0
  %273 = vmatpush1.bf16.msra.mxu0 0
  %274 = vmatprep.subr.bf16.mxu0 0
  %275 = vmatpush1.bf16.msra.mxu0 0
  %276 = vmatprep.subr.bf16.mxu0 0
  %277 = vmatpush1.bf16.msra.mxu0 0
  %278 = vmatprep.subr.bf16.mxu0 0
  %279 = vmatpush1.bf16.msra.mxu0 0
  %280 = vmatprep.subr.bf16.mxu0 0
  %281 = vmatpush1.bf16.msra.mxu0 0
  %282 = vmatprep.subr.bf16.mxu0 0
  %283 = vmatpush1.bf16.msra.mxu0 0
  %284 = vmatprep.subr.bf16.mxu0 0
  %285 = vmatpush1.bf16.msra.mxu0 0
  %286 = vmatprep.mubr.bf16.mxu0 0
  %287 = vmatmul.mubr.bf16.gmra.mrb[0].mxu0 %v252
  %v288 = vpop.f32.mrb[0].mxu0
  %v289 = vadd.f32 %v224, %v288
  %v290 = vpop.f32.mrb[0].mxu0
  %v291 = vpop.f32.mrb[0].mxu0
  %v292 = vpop.f32.mrb[0].mxu0
  %293 = vdwg.mxu0
  %vm294 = vcmask 15360
  %295 = vst.msk [vmem:[%s7] sm:$0xff] %vm294, %v289
  // Predicated region
  $region30: #{tpu_custom_call.1} parent=0 // pred_check
    _
  $region31: #{tpu_custom_call.1} parent=0 // pred_check_branch
    %297 = sbr.rel (0) target = $region33
  $region32: #{tpu_custom_call.1} parent=0 // pred_region
    _
  $region33: #{tpu_custom_call.1} parent=0 // pred_fallthru
    _
  // Predicated region
  $region34: #{tpu_custom_call.1} parent=0 // pred_check
    _
  $region35: #{tpu_custom_call.1} parent=0 // pred_check_branch
    %299 = sbr.rel (0) target = $region37
  $region36: #{tpu_custom_call.1} parent=0 // pred_region
    _
  $region37: #{tpu_custom_call.1} parent=0 // pred_fallthru
    _

</llo_original>
